<compile_context>
chip_gen: v6e
topology: v6e:2x2x1
jax: 0.10.0
libtpu: 0.0.40
codegen_flags: <defaults>
</compile_context>

<pallas_src>
import jax
import jax.numpy as jnp
from jax import lax
from jax.experimental import pallas as pl
from jax.experimental.pallas import tpu as pltpu


def _round_up(x, m):
    return ((x + m - 1) // m) * m


def _vmem_capacity_bytes():
    try:
        return int(pltpu.get_tpu_info().vmem_capacity_bytes)
    except Exception:
        return 64 << 20  # conservative (v7x-level) fallback


def _per_pixel_loss(logits_ref, labels_ref, sw_ref, cw_ref, *,
                    ignore_label, hw, lane_base, needs_tail_mask):
    """Masked per-pixel CE loss for one (C, T) block. Returns (1, T) f32."""
    logits = logits_ref[...].astype(jnp.float32)              # (C, T)
    labels = labels_ref[...].astype(jnp.int32)                # (1, T)

    # numerically stable log-sum-exp over the class (sublane) axis
    m = jnp.max(logits, axis=0, keepdims=True)                 # (1, T)
    lse = m + jnp.log(jnp.sum(jnp.exp(logits - m), axis=0, keepdims=True))

    # gather logits[label] via one-hot select (no dynamic lane gather on TPU)
    cls_iota = lax.broadcasted_iota(jnp.int32, logits.shape, 0)   # (C, T)
    onehot = cls_iota == labels                                    # (C, T)
    picked = jnp.sum(jnp.where(onehot, logits, 0.0), axis=0, keepdims=True)

    loss = lse - picked                                            # (1, T)

    if cw_ref is not None:  # per-class rescaling weight (CrossEntropyLoss weight=)
        cw = cw_ref[...].astype(jnp.float32)                       # (C, 1)
        w_cls = jnp.sum(jnp.where(onehot, cw, 0.0), axis=0, keepdims=True)
        loss = loss * w_cls
    if sw_ref is not None:  # per-pixel semantic weights
        loss = loss * sw_ref[...].astype(jnp.float32)

    # zero out ignored labels; tail/duplicate-block lanes only when needed
    valid = labels != ignore_label
    if needs_tail_mask:
        lane = lane_base + lax.broadcasted_iota(jnp.int32, labels.shape, 1)
        valid = valid & (lane < hw)
    # jnp.where is a select: garbage/NaN in masked-off lanes never propagates
    return jnp.where(valid, loss, 0.0)


def _make_sum_kernel(ignore_label, hw, tile, steps, has_sw, has_cw,
                     needs_tail_mask):
    def kernel(*refs):
        i = 0
        logits_ref = refs[i]; i += 1
        labels_ref = refs[i]; i += 1
        sw_ref = refs[i] if has_sw else None; i += int(has_sw)
        cw_ref = refs[i] if has_cw else None; i += int(has_cw)
        out_ref = refs[i]          # (1, 1) per-(half, batch) partial sum
        acc_ref = refs[i + 1]      # (1, tile) VMEM scratch accumulator

        c = pl.program_id(0)       # HW-half (megacore split)
        p = pl.program_id(2)       # HW tile within the half

        @pl.when(p == 0)
        def _():
            acc_ref[...] = jnp.zeros_like(acc_ref)

        lane_base = (c * steps + p) * tile
        acc_ref[...] += _per_pixel_loss(
            logits_ref, labels_ref, sw_ref, cw_ref,
            ignore_label=ignore_label, hw=hw, lane_base=lane_base,
            needs_tail_mask=needs_tail_mask)

        @pl.when(p == pl.num_programs(2) - 1)
        def _():
            # single cross-lane reduce + tiny store, once per (half, batch)
            out_ref[...] = jnp.sum(acc_ref[...], keepdims=True)

    return kernel


def _make_lossmap_kernel(ignore_label, hw, tile, has_sw, has_cw,
                         needs_tail_mask):
    def kernel(*refs):
        i = 0
        logits_ref = refs[i]; i += 1
        labels_ref = refs[i]; i += 1
        sw_ref = refs[i] if has_sw else None; i += int(has_sw)
        cw_ref = refs[i] if has_cw else None; i += int(has_cw)
        out_ref = refs[i]          # (1, tile) per-pixel losses (lane-dense)

        lane_base = pl.program_id(1) * tile
        out_ref[...] = _per_pixel_loss(
            logits_ref, labels_ref, sw_ref, cw_ref,
            ignore_label=ignore_label, hw=hw, lane_base=lane_base,
            needs_tail_mask=needs_tail_mask).astype(out_ref.dtype)

    return kernel


def deeplab_ce(logits_nchw, labels_nhw, semantic_weights=None, *,
               ignore_label=-1, top_k_percent_pixels=1.0, class_weight=None,
               target_block_bytes=3 << 20, use_approx_topk=False):
    """Matches DeepLabCE.forward. Accepts f32 or bf16 logits / sem. weights."""
    N, C, H, W = logits_nchw.shape
    HW = H * W
    hw_rounded = _round_up(HW, 128)

    # free, contiguous reshapes: no transpose and no padding passes over HBM
    logits3d = logits_nchw.reshape(N, C, HW)
    labels3d = labels_nhw.reshape(N, 1, HW)
    if labels3d.dtype != jnp.int32:
        labels3d = labels3d.astype(jnp.int32)

    has_sw = semantic_weights is not None
    sw3d = semantic_weights.reshape(N, 1, HW) if has_sw else None
    has_cw = class_weight is not None

    # ---- tile selection (HBM-bound: big DMA blocks, scaled by C & dtype) ----
    logits_bpl = C * jnp.dtype(logits3d.dtype).itemsize      # bytes / lane
    labels_bpl = jnp.dtype(labels3d.dtype).itemsize
    sw_bpl = jnp.dtype(sw3d.dtype).itemsize if has_sw else 0
    bytes_per_lane = logits_bpl + labels_bpl + sw_bpl

    tile = _round_up(max(target_block_bytes // max(logits_bpl, 1), 128), 128)
    tile = max(tile, min(4096, hw_rounded))
    tile = min(tile, hw_rounded)

    # generation-aware VMEM cap (v7x: 64 MiB physical, v5e/v6e: 128 MiB)
    phys = _vmem_capacity_bytes()
    budget = int(phys * 0.40)
    tile_cap = max((budget // (2 * bytes_per_lane + 4)) // 128 * 128, 128)
    tile = max(min(tile, tile_cap), 128)

    num_tiles = pl.cdiv(HW, tile)

    resident = 2 * bytes_per_lane * tile + 4 * tile + (64 << 10)
    vmem_limit = int(min(phys * 0.85, max(2 * resident, 32 << 20)))

    # ------------------------- sum path (top_k == 1.0) -----------------------
    if top_k_percent_pixels == 1.0:
        split = 2 if num_tiles >= 2 else 1     # feed both v7x TensorCores
        steps = pl.cdiv(num_tiles, split)
        needs_tail_mask = (split * steps * tile != HW)

        def hw_block(c, p):
            # clamp keeps the DMA in-bounds for the (masked) duplicate block
            return jnp.minimum(c * steps + p, num_tiles - 1)

        in_arrays = [logits3d, labels3d]
        in_specs = [
            pl.BlockSpec((None, C, tile), lambda c, n, p: (n, 0, hw_block(c, p))),
            pl.BlockSpec((None, 1, tile), lambda c, n, p: (n, 0, hw_block(c, p))),
        ]
        if has_sw:
            in_arrays.append(sw3d)
            in_specs.append(
                pl.BlockSpec((None, 1, tile), lambda c, n, p: (n, 0, hw_block(c, p))))
        if has_cw:
            in_arrays.append(jnp.asarray(class_weight, jnp.float32).reshape(C, 1))
            in_specs.append(pl.BlockSpec((C, 1), lambda c, n, p: (0, 0)))

        kernel = _make_sum_kernel(ignore_label, HW, tile, steps,
                                  has_sw, has_cw, needs_tail_mask)
        partial = pl.pallas_call(
            kernel,
            out_shape=jax.ShapeDtypeStruct((split, N, 1, 1), jnp.float32),
            grid_spec=pltpu.PrefetchScalarGridSpec(
                num_scalar_prefetch=0,
                grid=(split, N, steps),
                in_specs=in_specs,
                out_specs=pl.BlockSpec((None, None, 1, 1),
                                       lambda c, n, p: (c, n, 0, 0)),
                scratch_shapes=[pltpu.VMEM((1, tile), jnp.float32)],
            ),
            compiler_params=pltpu.CompilerParams(
                dimension_semantics=("parallel", "parallel", "arbitrary"),
                vmem_limit_bytes=vmem_limit),
        )(*in_arrays)
        # .mean() in PyTorch divides by the TOTAL pixel count (ignored ones are 0)
        return jnp.sum(partial) / (N * HW)

    # -------------------- hard-pixel mining path (top_k < 1.0) ---------------
    needs_tail_mask = (num_tiles * tile != HW)
    in_arrays = [logits3d, labels3d]
    in_specs = [
        pl.BlockSpec((None, C, tile), lambda n, p: (n, 0, p)),
        pl.BlockSpec((None, 1, tile), lambda n, p: (n, 0, p)),
    ]
    if has_sw:
        in_arrays.append(sw3d)
        in_specs.append(pl.BlockSpec((None, 1, tile), lambda n, p: (n, 0, p)))
    if has_cw:
        in_arrays.append(jnp.asarray(class_weight, jnp.float32).reshape(C, 1))
        in_specs.append(pl.BlockSpec((C, 1), lambda n, p: (0, 0)))

    kernel = _make_lossmap_kernel(ignore_label, HW, tile,
                                  has_sw, has_cw, needs_tail_mask)
    loss_map = pl.pallas_call(
        kernel,
        out_shape=jax.ShapeDtypeStruct((N, 1, HW), jnp.float32),
        grid_spec=pltpu.PrefetchScalarGridSpec(
            num_scalar_prefetch=0,
            grid=(N, num_tiles),
            in_specs=in_specs,
            out_specs=pl.BlockSpec((None, 1, tile), lambda n, p: (n, 0, p)),
        ),
        compiler_params=pltpu.CompilerParams(
            dimension_semantics=("parallel", "parallel"),
            vmem_limit_bytes=vmem_limit),
    )(*in_arrays)

    pixel_losses = loss_map.reshape(-1)
    k = max(1, int(top_k_percent_pixels * pixel_losses.size))
    if use_approx_topk:
        topk_vals = lax.approx_max_k(pixel_losses, k)[0]
    else:
        topk_vals = lax.top_k(pixel_losses, k)[0]
    return jnp.mean(topk_vals)


def _reference(logits, labels, semantic_weights=None, ignore_label=-1,
               top_k_percent_pixels=1.0, class_weight=None):
    """Pure-JAX mirror of DeepLabCE.forward (always computed in f32)."""
    N, C, H, W = logits.shape
    logp = jax.nn.log_softmax(logits.astype(jnp.float32), axis=1)     # (N,C,H,W)
    safe = jnp.clip(labels, 0, C - 1)
    picked = jnp.take_along_axis(logp, safe[:, None], axis=1)[:, 0]   # (N,H,W)
    loss = -picked
    if class_weight is not None:
        loss = loss * jnp.asarray(class_weight, jnp.float32)[safe]
    valid = labels != ignore_label
    loss = jnp.where(valid, loss, 0.0)
    if semantic_weights is not None:
        loss = loss * semantic_weights.astype(jnp.float32)
    loss = loss.reshape(-1)
    if top_k_percent_pixels == 1.0:
        return jnp.mean(loss)
    k = max(1, int(top_k_percent_pixels * loss.size))
    return jnp.mean(lax.top_k(loss, k)[0])


if __name__ == "__main__":
    key = jax.random.PRNGKey(0)
    k1, k2, k3, k4 = jax.random.split(key, 4)

    N, C, H, W = 2, 4, 16, 16
    ignore_label = -1

    logits = jax.random.normal(k1, (N, C, H, W), dtype=jnp.float32)
    labels = jax.random.randint(k2, (N, H, W), 0, C, dtype=jnp.int32)
    ignore_mask = jax.random.uniform(k3, (N, H, W)) < 0.2
    labels = jnp.where(ignore_mask, ignore_label, labels)
    sem_w = jax.random.uniform(k4, (N, H, W), dtype=jnp.float32) + 0.5

    # 1) default DeepLabCE: top_k_percent_pixels == 1.0, no extra weights
    out1 = jax.block_until_ready(deeplab_ce(logits, labels, ignore_label=ignore_label))
    ref1 = _reference(logits, labels, ignore_label=ignore_label)
    assert jnp.allclose(out1, ref1, rtol=1e-4, atol=1e-5), (out1, ref1)

    # 2) semantic_weights + hard-pixel mining (top 30%)
    out2 = jax.block_until_ready(
        deeplab_ce(logits, labels, semantic_weights=sem_w,
                   ignore_label=ignore_label, top_k_percent_pixels=0.3))
    ref2 = _reference(logits, labels, semantic_weights=sem_w,
                      ignore_label=ignore_label, top_k_percent_pixels=0.3)
    assert jnp.allclose(out2, ref2, rtol=1e-4, atol=1e-5), (out2, ref2)

    # 3) per-class rescaling weight (CrossEntropyLoss weight= argument)
    cls_w = jnp.array([1.0, 2.0, 0.5, 1.5], jnp.float32)
    out3 = jax.block_until_ready(
        deeplab_ce(logits, labels, ignore_label=ignore_label, class_weight=cls_w))
    ref3 = _reference(logits, labels, ignore_label=ignore_label, class_weight=cls_w)
    assert jnp.allclose(out3, ref3, rtol=1e-4, atol=1e-5), (out3, ref3)

    # 4) bf16 logits (kernel upcasts in VMEM; halves HBM traffic on real sizes)
    logits_bf16 = logits.astype(jnp.bfloat16)
    out4 = jax.block_until_ready(
        deeplab_ce(logits_bf16, labels, ignore_label=ignore_label))
    ref4 = _reference(logits_bf16.astype(jnp.float32), labels,
                      ignore_label=ignore_label)
    assert jnp.allclose(out4, ref4, rtol=1e-4, atol=1e-5), (out4, ref4)

    # 5) HW not a multiple of 128: exercises the tail-masking path (sum + top-k)
    Hn, Wn = 10, 13
    logits5 = jax.random.normal(k1, (1, 5, Hn, Wn), dtype=jnp.float32)
    labels5 = jax.random.randint(k2, (1, Hn, Wn), 0, 5, dtype=jnp.int32)
    labels5 = jnp.where(jax.random.uniform(k3, (1, Hn, Wn)) < 0.2,
                        ignore_label, labels5)
    out5a = jax.block_until_ready(deeplab_ce(logits5, labels5, ignore_label=ignore_label))
    ref5a = _reference(logits5, labels5, ignore_label=ignore_label)
    assert jnp.allclose(out5a, ref5a, rtol=1e-4, atol=1e-5), (out5a, ref5a)
    out5b = jax.block_until_ready(
        deeplab_ce(logits5, labels5, ignore_label=ignore_label,
                   top_k_percent_pixels=0.5))
    ref5b = _reference(logits5, labels5, ignore_label=ignore_label,
                       top_k_percent_pixels=0.5)
    assert jnp.allclose(out5b, ref5b, rtol=1e-4, atol=1e-5), (out5b, ref5b)

    print("KERNEL_OK")
</pallas_src>

<mosaic_0001>
module attributes {stable_mosaic.version = 11 : i64} {
  func.func @kernel(%arg0: i32, %arg1: i32, %arg2: i32, %arg3: memref<1x4x256xf32, #tpu.memory_space<vmem>>, %arg4: memref<1x1x256xi32, #tpu.memory_space<vmem>>, %arg5: memref<1x1x1x1xf32, #tpu.memory_space<vmem>>, %arg6: memref<1x256xf32, #tpu.memory_space<vmem>>) attributes {dimension_semantics = [#tpu.dimension_semantics<parallel>, #tpu.dimension_semantics<parallel>, #tpu.dimension_semantics<arbitrary>], iteration_bounds = array<i64: 1, 2, 1>, scalar_prefetch = 0 : i64, scratch_operands = 1 : i64, tpu.core_type = #tpu.core_type<tc>, window_params = [{transform_indices = @transform_0, window_bounds = array<i64: 1, 4, 256>}, {transform_indices = @transform_1, window_bounds = array<i64: 1, 1, 256>}, {transform_indices = @transform_2, window_bounds = array<i64: 1, 1, 1, 1>}]} {
    %c0_i32 = arith.constant 0 : i32
    %0 = arith.cmpi eq, %arg2, %c0_i32 : i32
    %1 = arith.extui %0 : i1 to i32
    %c0_i32_0 = arith.constant 0 : i32
    %2 = arith.cmpi ne, %1, %c0_i32_0 : i32
    scf.if %2 {
      %cst_16 = arith.constant 0.000000e+00 : f32
      %34 = vector.broadcast %cst_16 : f32 to vector<1x256xf32>
      %c0_17 = arith.constant 0 : index
      %c0_18 = arith.constant 0 : index
      %35 = vector.load %arg6[%c0_17, %c0_18] : memref<1x256xf32, #tpu.memory_space<vmem>>, vector<1x256xf32>
      tpu.vector_store %arg6[%c0_17, %c0_18], %34 {strides = array<i32>} : memref<1x256xf32, #tpu.memory_space<vmem>>, vector<1x256xf32>,
    } else {
    }
    %c0 = arith.constant 0 : index
    %c0_1 = arith.constant 0 : index
    %3 = vector.load %arg6[%c0, %c0_1] : memref<1x256xf32, #tpu.memory_space<vmem>>, vector<1x256xf32>
    %c0_2 = arith.constant 0 : index
    %c0_3 = arith.constant 0 : index
    %c0_4 = arith.constant 0 : index
    %4 = vector.load %arg3[%c0_2, %c0_3, %c0_4] : memref<1x4x256xf32, #tpu.memory_space<vmem>>, vector<1x4x256xf32>
    %5 = vector.shape_cast %4 : vector<1x4x256xf32> to vector<4x256xf32>
    %c0_5 = arith.constant 0 : index
    %c0_6 = arith.constant 0 : index
    %c0_7 = arith.constant 0 : index
    %6 = vector.load %arg4[%c0_5, %c0_6, %c0_7] : memref<1x1x256xi32, #tpu.memory_space<vmem>>, vector<1x1x256xi32>
    %7 = vector.shape_cast %6 : vector<1x1x256xi32> to vector<1x256xi32>
    %cst = arith.constant dense<0xFF800000> : vector<256xf32>
    %8 = vector.multi_reduction <maximumf>, %5, %cst [0] : vector<4x256xf32> to vector<256xf32>
    %9 = vector.shape_cast %8 : vector<256xf32> to vector<1x256xf32>
    %10 = vector.broadcast %9 : vector<1x256xf32> to vector<4x256xf32>
    %11 = arith.subf %5, %10 : vector<4x256xf32>
    %12 = math.exp %11 : vector<4x256xf32>
    %cst_8 = arith.constant dense<0.000000e+00> : vector<256xf32>
    %13 = vector.multi_reduction <add>, %12, %cst_8 [0] : vector<4x256xf32> to vector<256xf32>
    %14 = vector.shape_cast %13 : vector<256xf32> to vector<1x256xf32>
    %15 = math.log %14 : vector<1x256xf32>
    %16 = arith.addf %9, %15 : vector<1x256xf32>
    %17 = tpu.iota {dimensions = array<i32: 0>} : vector<4x256xi32>
    %18 = vector.broadcast %7 : vector<1x256xi32> to vector<4x256xi32>
    %19 = arith.cmpi eq, %17, %18 : vector<4x256xi32>
    %cst_9 = arith.constant 0.000000e+00 : f32
    %20 = vector.broadcast %cst_9 : f32 to vector<4x256xf32>
    %21 = arith.select %19, %5, %20 : vector<4x256xi1>, vector<4x256xf32>
    %cst_10 = arith.constant dense<0.000000e+00> : vector<256xf32>
    %22 = vector.multi_reduction <add>, %21, %cst_10 [0] : vector<4x256xf32> to vector<256xf32>
    %23 = vector.shape_cast %22 : vector<256xf32> to vector<1x256xf32>
    %24 = arith.subf %16, %23 : vector<1x256xf32>
    %c-1_i32 = arith.constant -1 : i32
    %25 = vector.broadcast %c-1_i32 : i32 to vector<1x256xi32>
    %26 = arith.cmpi ne, %7, %25 : vector<1x256xi32>
    %cst_11 = arith.constant 0.000000e+00 : f32
    %27 = vector.broadcast %cst_11 : f32 to vector<1x256xf32>
    %28 = arith.select %26, %24, %27 : vector<1x256xi1>, vector<1x256xf32>
    %29 = arith.addf %3, %28 : vector<1x256xf32>
    %c0_12 = arith.constant 0 : index
    %c0_13 = arith.constant 0 : index
    %30 = vector.load %arg6[%c0_12, %c0_13] : memref<1x256xf32, #tpu.memory_space<vmem>>, vector<1x256xf32>
    tpu.vector_store %arg6[%c0_12, %c0_13], %29 {strides = array<i32>} : memref<1x256xf32, #tpu.memory_space<vmem>>, vector<1x256xf32>,
    %c0_i32_14 = arith.constant 0 : i32
    %31 = arith.cmpi eq, %arg2, %c0_i32_14 : i32
    %32 = arith.extui %31 : i1 to i32
    %c0_i32_15 = arith.constant 0 : i32
    %33 = arith.cmpi ne, %32, %c0_i32_15 : i32
    scf.if %33 {
      %c0_16 = arith.constant 0 : index
      %c0_17 = arith.constant 0 : index
      %34 = vector.load %arg6[%c0_16, %c0_17] : memref<1x256xf32, #tpu.memory_space<vmem>>, vector<1x256xf32>
      %35 = vector.shape_cast %34 : vector<1x256xf32> to vector<1x1x256xf32>
      %cst_18 = arith.constant dense<0.000000e+00> : vector<1xf32>
      %36 = vector.multi_reduction <add>, %35, %cst_18 [1, 2] : vector<1x1x256xf32> to vector<1xf32>
      %37 = vector.shape_cast %36 : vector<1xf32> to vector<1x1x1xf32>
      %38 = vector.extract %37[0, 0, 0] : f32 from vector<1x1x1xf32>
      %39 = vector.broadcast %38 : f32 to vector<1x1xf32>
      %c0_19 = arith.constant 0 : index
      %c0_20 = arith.constant 0 : index
      %c0_21 = arith.constant 0 : index
      %c0_22 = arith.constant 0 : index
      %40 = vector.load %arg5[%c0_19, %c0_20, %c0_21, %c0_22] : memref<1x1x1x1xf32, #tpu.memory_space<vmem>>, vector<1x1x1x1xf32>
      %41 = vector.shape_cast %40 : vector<1x1x1x1xf32> to vector<1x1xf32>
      %42 = vector.shape_cast %39 : vector<1x1xf32> to vector<1x1x1x1xf32>
      tpu.vector_store %arg5[%c0_19, %c0_20, %c0_21, %c0_22], %42 {strides = array<i32>} : memref<1x1x1x1xf32, #tpu.memory_space<vmem>>, vector<1x1x1x1xf32>,
    } else {
    }
    return
  }
  func.func @transform_0(%arg0: i32, %arg1: i32, %arg2: i32) -> (i32, i32, i32) {
    %c1_i32 = arith.constant 1 : i32
    %0 = arith.muli %arg0, %c1_i32 : i32
    %1 = arith.addi %0, %arg2 : i32
    %c0_i32 = arith.constant 0 : i32
    %2 = arith.minsi %1, %c0_i32 : i32
    %c0_i32_0 = arith.constant 0 : i32
    %c0_i32_1 = arith.constant 0 : i32
    return %arg1, %c0_i32_0, %2 : i32, i32, i32
  }
  func.func @transform_1(%arg0: i32, %arg1: i32, %arg2: i32) -> (i32, i32, i32) {
    %c1_i32 = arith.constant 1 : i32
    %0 = arith.muli %arg0, %c1_i32 : i32
    %1 = arith.addi %0, %arg2 : i32
    %c0_i32 = arith.constant 0 : i32
    %2 = arith.minsi %1, %c0_i32 : i32
    %c0_i32_0 = arith.constant 0 : i32
    %c0_i32_1 = arith.constant 0 : i32
    return %arg1, %c0_i32_0, %2 : i32, i32, i32
  }
  func.func @transform_2(%arg0: i32, %arg1: i32, %arg2: i32) -> (i32, i32, i32, i32) {
    %c0_i32 = arith.constant 0 : i32
    %c0_i32_0 = arith.constant 0 : i32
    %c0_i32_1 = arith.constant 0 : i32
    return %arg0, %arg1, %c0_i32, %c0_i32_0 : i32, i32, i32, i32
  }
}

</mosaic_0001>

<llo_original>
// kernel: tpu_custom_call.1
$region0: #{tpu_custom_call.1}
  #allocation0 [shape = 'u32[]', space=smem, size = 0x4, offset = 0x4, fixed_abs, tag = 'smem constant byte address 0x4 - core index']
  #allocation1 [shape = 'u32[144,128]{1,0:T(1,128)}', space=vmem, size = 0x12000, scoped, tag = 'internal scratch']
  #allocation2 [shape = 'f32[1,256]{1,0:T(1,128)}', space=vmem, size = 0x400, scoped, tag = 'scratch operand']
  %s0 = inlined_call_operand.hbm [shape: f32[2,4,256], index: 0, kind: input, shape index: {}]
  %s1 = inlined_call_operand.hbm [shape: s32[2,1,256], index: 1, kind: input, shape index: {}]
  %s2 = inlined_call_operand.vmem [shape: f32[1,2,1,1], index: 2, kind: output, shape index: {}]
  %s3 = sld [smem:[#allocation0]]
  $region57: #{tpu_custom_call.1} parent=0
    _
  %s5 = ssub.s32 1, %s3
  %s6 = scalar_select 0, %s5, %s3
  $region1: #{tpu_custom_call.1} parent=0
    #allocation3 [shape = 'u8[8192]{0}', space=vmem, size = 0x2000, scoped, tag = 'input window, operand 0']
    #allocation4 [shape = 's32[2]{0}', space=sflag, size = 0x8, scoped, tag = 'scoped memory for tpu_custom_call.1']
    #allocation5 [shape = 'u8[2048]{0}', space=vmem, size = 0x800, scoped, tag = 'input window, operand 1']
    #allocation6 [shape = 's32[2]{0}', space=sflag, size = 0x8, scoped, tag = 'scoped memory for tpu_custom_call.1']
    %7 = vsyncpa [#allocation4], 0
    %s8 = scalar_lea.sflag [#allocation4], 1
    %9 = vsyncpa %s8, 0
    %10 = vsyncpa [#allocation6], 0
    %s11 = scalar_lea.sflag [#allocation6], 1
    %12 = vsyncpa %s11, 0
    loop: start=0, step=1, limit=4
    $region2: #{tpu_custom_call.1} parent=1 // loop_pre_header
      _
    $region3: #{tpu_custom_call.1} parent=1 // loop_header
      %s14 = sphi 0, %s18
      %p15 = scmp.ge.s32.totalorder %s14, 4
      %s21 = sphi 0, %s40
      %s22 = sphi 0, %s36
      %s23 = sphi 0, %s32
      %s24 = sphi 0, %s21
      %s25 = sphi 0, %s22
      %s26 = sphi 0, %s23
      %s27 = sphi 0, %s24
      %s28 = sphi 0, %s25
      %s29 = sphi 0, %s26
      %s51 = sphi 0, %s53
      %s54 = sphi 0, %s51
      %s55 = sphi 0, %s54
      %s71 = sphi 0, %s55
      %s85 = sphi 0, %s87
      %s88 = sphi 0, %s85
      %s89 = sphi 0, %s88
      %s105 = sphi 0, %s89
      %s113 = sphi 0, %s115
      %s116 = sphi 0, %s113
      %s117 = sphi 0, %s116
      %s133 = sphi 0, %s117
    $region4: #{tpu_custom_call.1} parent=1 // loop_header_branch
      %17 = sbr.rel (%p15) target = $region8
    $region5: #{tpu_custom_call.1} parent=1 // loop_body
      %s19 = ssub.s32 %s14, 1
      %s20 = ssub.s32 %s14, 2
      %s30 = sadd.s32 1, %s23
      %p31 = scmp.ge.s32.totalorder %s30, 1
      %s32 = scalar_select %p31, 0, %s30
      %s33 = sadd.s32 1, %s22
      %s34 = scalar_select %p31, %s33, %s22
      %p35 = scmp.ge.s32.totalorder %s34, 2
      %s36 = scalar_select %p35, 0, %s34
      %s37 = sadd.s32 1, %s21
      %s38 = scalar_select %p35, %s37, %s21
      %p39 = scmp.ge.s32.totalorder %s38, 1
      %s40 = scalar_select %p39, 0, %s38
      %s41 = sadd.s32 %s21, %s23
      %p42 = scmp.lt.s32.totalorder %s41, 0
      %s43 = scalar_select %p42, %s41, 0
      %s44 = sadd.s32 %s40, %s32
      %p45 = scmp.lt.s32.totalorder %s44, 0
      %s46 = scalar_select %p45, %s44, 0
      %s47 = ssub.s32 %s22, %s36
      %s48 = ssub.s32 %s43, %s46
      %s49 = sor.u32 %s47, %s48
      %p50 = scmp.eq.s32.totalorder %s49, 0
      %s52 = sadd.s32 %s51, 1
      %s53 = scalar_select %p50, %s51, %s52
      %p56 = pneg %p50
      %p57 = scmp.eq.s32.totalorder %s14, 1
      %p58 = por %p56, %p57
      %p59 = scmp.ne.s32.totalorder %s51, %s54
      %p60 = scmp.eq.s32.totalorder %s14, 0
      %p61 = por %p59, %p60
      %p62 = scmp.ne.s32.totalorder %s51, %s54
      %p63 = scmp.eq.s32.totalorder %s19, 1
      %p64 = por %p62, %p63
      %p65 = scmp.ne.s32.totalorder %s54, %s55
      %p66 = scmp.eq.s32.totalorder %s19, 0
      %p67 = por %p65, %p66
      %p68 = scmp.ne.s32.totalorder %s54, %s55
      %p69 = scmp.eq.s32.totalorder %s20, 1
      %p70 = por %p68, %p69
      %p72 = scmp.ne.s32.totalorder %s55, %s71
      %p73 = scmp.eq.s32.totalorder %s20, 0
      %p74 = por %p72, %p73
      %s75 = sadd.s32 %s21, %s23
      %p76 = scmp.lt.s32.totalorder %s75, 0
      %s77 = scalar_select %p76, %s75, 0
      %s78 = sadd.s32 %s40, %s32
      %p79 = scmp.lt.s32.totalorder %s78, 0
      %s80 = scalar_select %p79, %s78, 0
      %s81 = ssub.s32 %s22, %s36
      %s82 = ssub.s32 %s77, %s80
      %s83 = sor.u32 %s81, %s82
      %p84 = scmp.eq.s32.totalorder %s83, 0
      %s86 = sadd.s32 %s85, 1
      %s87 = scalar_select %p84, %s85, %s86
      %p90 = pneg %p84
      %p91 = scmp.eq.s32.totalorder %s14, 1
      %p92 = por %p90, %p91
      %p93 = scmp.ne.s32.totalorder %s85, %s88
      %p94 = scmp.eq.s32.totalorder %s14, 0
      %p95 = por %p93, %p94
      %p96 = scmp.ne.s32.totalorder %s85, %s88
      %p97 = scmp.eq.s32.totalorder %s19, 1
      %p98 = por %p96, %p97
      %p99 = scmp.ne.s32.totalorder %s88, %s89
      %p100 = scmp.eq.s32.totalorder %s19, 0
      %p101 = por %p99, %p100
      %p102 = scmp.ne.s32.totalorder %s88, %s89
      %p103 = scmp.eq.s32.totalorder %s20, 1
      %p104 = por %p102, %p103
      %p106 = scmp.ne.s32.totalorder %s89, %s105
      %p107 = scmp.eq.s32.totalorder %s20, 0
      %p108 = por %p106, %p107
      %s109 = ssub.s32 %s21, %s40
      %s110 = ssub.s32 %s22, %s36
      %s111 = sor.u32 %s109, %s110
      %p112 = scmp.eq.s32.totalorder %s111, 0
      %s114 = sadd.s32 %s113, 1
      %s115 = scalar_select %p112, %s113, %s114
      %p118 = pneg %p112
      %p119 = scmp.eq.s32.totalorder %s14, 1
      %p120 = por %p118, %p119
      %p121 = scmp.ne.s32.totalorder %s113, %s116
      %p122 = scmp.eq.s32.totalorder %s14, 0
      %p123 = por %p121, %p122
      %p124 = scmp.ne.s32.totalorder %s113, %s116
      %p125 = scmp.eq.s32.totalorder %s19, 1
      %p126 = por %p124, %p125
      %p127 = scmp.ne.s32.totalorder %s116, %s117
      %p128 = scmp.eq.s32.totalorder %s19, 0
      %p129 = por %p127, %p128
      %p130 = scmp.ne.s32.totalorder %s116, %s117
      %p131 = scmp.eq.s32.totalorder %s20, 1
      %p132 = por %p130, %p131
      %p134 = scmp.ne.s32.totalorder %s117, %s133
      %p135 = scmp.eq.s32.totalorder %s20, 0
      %p136 = por %p134, %p135
      %p137 = scmp.le.s32.totalorder 1, %s14
      %p138 = scmp.lt.s32.totalorder %s14, 3
      %p139 = pnand %p137, %p138
      %p140 = pneg %p139
      // Predicated region
      $region9: #{tpu_custom_call.1} parent=5 // pred_check
        _
      $region10: #{tpu_custom_call.1} parent=5 // pred_check_branch
        %142 = sbr.rel (%p139) target = $region12
      $region11: #{tpu_custom_call.1} parent=5 // pred_region
        %s143 = ssub.s32 %s14, 1
      $region12: #{tpu_custom_call.1} parent=5 // pred_fallthru
        _
      %p144 = scmp.lt.s32.totalorder %s14, 2
      // Predicated region
      $region13: #{tpu_custom_call.1} parent=5 // pred_check
        %p145 = pneg %p144
      $region14: #{tpu_custom_call.1} parent=5 // pred_check_branch
        %147 = sbr.rel (%p145) target = $region16
      $region15: #{tpu_custom_call.1} parent=5 // pred_region
        // Predicated region
        $region17: #{tpu_custom_call.1} parent=15 // pred_check
          %p148 = pneg %p61
        $region18: #{tpu_custom_call.1} parent=15 // pred_check_branch
          %150 = sbr.rel (%p148) target = $region20
        $region19: #{tpu_custom_call.1} parent=15 // pred_region
          %s151 = sand.u32 %s51, 1
          %s152 = scalar_lea.sflag [#allocation4], %s151
          %s153 = sand.u32 %s51, 1
          %s154 = smul.addr %s153, 8
          %s155 = scalar_lea.vmem [#allocation3], %s154
          %s156 = sadd.s32 %s21, %s23
          %p157 = scmp.lt.s32.totalorder %s156, 0
          %s158 = scalar_select %p157, %s156, 0
          %s159 = smul.u32 2, %s158
          %s161 = ssub.s32 128, 128
          %162 = vsyncadd %s152, %s161
          %s163 = smul.addr %s22, 2
          %s164 = sadd.s32 %s159, %s163
          %s165 = smul.addr %s164, 64
          %s166 = scalar_lea.hbm %s0, %s165
          %s168 = sshll.u32 %s155, 4
          %s169 = int_to_ptr.vmem [resolvable:$true] %s168
          %171 = dma.hbm_to_vmem [thread:$0]  %s166, 128, %s169, %s152
        $region20: #{tpu_custom_call.1} parent=15 // pred_fallthru
          _
        // Predicated region
        $region21: #{tpu_custom_call.1} parent=15 // pred_check
          %p172 = pneg %p95
        $region22: #{tpu_custom_call.1} parent=15 // pred_check_branch
          %174 = sbr.rel (%p172) target = $region24
        $region23: #{tpu_custom_call.1} parent=15 // pred_region
          %s175 = sand.u32 %s85, 1
          %s176 = scalar_lea.sflag [#allocation6], %s175
          %s177 = sand.u32 %s85, 1
          %s178 = smul.addr %s177, 2
          %s179 = scalar_lea.vmem [#allocation5], %s178
          %s180 = sadd.s32 %s21, %s23
          %p181 = scmp.lt.s32.totalorder %s180, 0
          %s182 = scalar_select %p181, %s180, 0
          %s183 = smul.u32 2, %s182
          %s185 = ssub.s32 32, 32
          %186 = vsyncadd %s176, %s185
          %s187 = smul.addr %s22, 2
          %s188 = sadd.s32 %s183, %s187
          %s189 = smul.addr %s188, 16
          %s190 = scalar_lea.hbm %s1, %s189
          %s192 = sshll.u32 %s179, 4
          %s193 = int_to_ptr.vmem [resolvable:$true] %s192
          %195 = dma.hbm_to_vmem [thread:$0]  %s190, 32, %s193, %s176
        $region24: #{tpu_custom_call.1} parent=15 // pred_fallthru
          _
      $region16: #{tpu_custom_call.1} parent=5 // pred_fallthru
        _
      %p196 = scmp.le.s32.totalorder 1, %s14
      %p197 = scmp.lt.s32.totalorder %s14, 3
      %p198 = pnand %p196, %p197
      %p199 = pneg %p198
      // Predicated region
      $region25: #{tpu_custom_call.1} parent=5 // pred_check
        _
      $region26: #{tpu_custom_call.1} parent=5 // pred_check_branch
        %201 = sbr.rel (%p198) target = $region28
      $region27: #{tpu_custom_call.1} parent=5 // pred_region
        %s202 = ssub.s32 %s14, 1
        %s203 = sand.u32 %s54, 1
        %s204 = scalar_lea.sflag [#allocation4], %s203
        %s205 = sand.u32 %s54, 1
        %s206 = smul.addr %s205, 8
        %s207 = scalar_lea.vmem [#allocation3], %s206
        // Predicated region
        $region29: #{tpu_custom_call.1} parent=27 // pred_check
          %p208 = pneg %p67
        $region30: #{tpu_custom_call.1} parent=27 // pred_check_branch
          %210 = sbr.rel (%p208) target = $region32
        $region31: #{tpu_custom_call.1} parent=27 // pred_region
          %211 = dma.done %s204, 128
        $region32: #{tpu_custom_call.1} parent=27 // pred_fallthru
          _
        %s212 = sand.u32 %s88, 1
        %s213 = scalar_lea.sflag [#allocation6], %s212
        %s214 = sand.u32 %s88, 1
        %s215 = smul.addr %s214, 2
        %s216 = scalar_lea.vmem [#allocation5], %s215
        // Predicated region
        $region33: #{tpu_custom_call.1} parent=27 // pred_check
          %p217 = pneg %p101
        $region34: #{tpu_custom_call.1} parent=27 // pred_check_branch
          %219 = sbr.rel (%p217) target = $region36
        $region35: #{tpu_custom_call.1} parent=27 // pred_region
          %220 = dma.done %s213, 32
        $region36: #{tpu_custom_call.1} parent=27 // pred_fallthru
          _
        %s221 = sand.u32 %s54, 1
        %s222 = scalar_lea.sflag [#allocation4], %s221
        %s223 = sand.u32 %s54, 1
        %s224 = smul.addr %s223, 8
        %s225 = scalar_lea.vmem [#allocation3], %s224
        %p226 = pneg %p67
        %p227 = pneg %p64
        %s228 = sand.u32 %s88, 1
        %s229 = scalar_lea.sflag [#allocation6], %s228
        %s230 = sand.u32 %s88, 1
        %s231 = smul.addr %s230, 2
        %s232 = scalar_lea.vmem [#allocation5], %s231
        %p233 = pneg %p101
        %p234 = pneg %p98
        %p235 = pneg %p129
        %p236 = pneg %p126
        %p237 = scmp.lt.s32.totalorder %s24, 0
        %s238 = scalar_select %p237, %s24, 0
        %p239 = scmp.lt.s32.totalorder %s25, 1
        %s240 = scalar_select %p239, %s25, 1
        %s241 = smul.addr %s238, 2
        %s242 = sadd.s32 %s240, %s241
        %s243 = scalar_lea.vmem %s2, %s242
        %s244 = sadd.s32 %s24, %s26
        %p245 = scmp.lt.s32.totalorder %s244, 0
        %s246 = scalar_select %p245, %s244, 0
        %s247 = smul.u32 2, %s246
        %s248 = sadd.s32 %s24, %s26
        %p249 = scmp.lt.s32.totalorder %s248, 0
        %s250 = scalar_select %p249, %s248, 0
        %s251 = smul.u32 2, %s250
        %p252 = scmp.lt.s32.totalorder %s24, 0
        %s253 = scalar_select %p252, %s24, 0
        %p254 = scmp.lt.s32.totalorder %s25, 1
        %s255 = scalar_select %p254, %s25, 1
        %s256 = smul.addr %s253, 2
        %s257 = sadd.s32 %s255, %s256
        %s258 = scalar_lea.vmem %s2, %s257
        %p259 = scmp.eq.s32.totalorder %s26, 0
        // Predicated region
        $region37: #{tpu_custom_call.1} parent=27 // pred_check
          %p260 = pneg %p259
        $region38: #{tpu_custom_call.1} parent=27 // pred_check_branch
          %262 = sbr.rel (%p260) target = $region40
        $region39: #{tpu_custom_call.1} parent=27 // pred_region
          %v263 = vlaneseq
          %vm264 = vcmp.ge.s32.totalorder %v263, 0
          %vm265 = vcmp.lt.s32.totalorder %v263, 256
          %vm266 = vmand %vm264, %vm265
          %267 = vst.msk [vmem:[#allocation2] sm:$0x3] %vm266, 0.0
        $region40: #{tpu_custom_call.1} parent=27 // pred_fallthru
          _
        %v268 = vld [vmem:[#allocation2] sm:$0x3]
        %v269 = vld [vmem:[%s207] sm:$0xff]
        %v270 = vld [vmem:[%s216] sm:$0x3]
        %v272 = vcombine.high %v269, %v269
        %vm274 = vcmask 1043456
        %v275 = vsel %vm274, %v269, -inf
        %v276 = vrot.slane %v275, 4
        %v277 = vmax.f32 %v275, %v276
        %v278 = vrot.slane %v277, 2
        %v279 = vmax.f32 %v277, %v278
        %v280 = vrot.slane %v279, 1
        %v281 = vmax.f32 %v279, %v280
        %v282 = vsel %vm274, %v272, -inf
        %v283 = vrot.slane %v282, 4
        %v284 = vmax.f32 %v282, %v283
        %v285 = vrot.slane %v284, 2
        %v286 = vmax.f32 %v284, %v285
        %v287 = vrot.slane %v286, 1
        %v288 = vmax.f32 %v286, %v287
        %v291 = vcombine.low %v281, %v288
        %v293 = vsub.f32 %v269, %v291
        %v294 = vmul.f32 %v293, 1.442695
        %v295 = vpow.pop %v294
        %v297 = vcombine.high %v295, %v295
        %v299 = vsel %vm274, %v295, 0.0
        %v300 = vrot.slane %v299, 4
        %v301 = vadd.f32 %v299, %v300
        %v302 = vrot.slane %v301, 2
        %v303 = vadd.f32 %v301, %v302
        %v304 = vrot.slane %v303, 1
        %v305 = vadd.f32 %v303, %v304
        %v306 = vsel %vm274, %v297, 0.0
        %v307 = vrot.slane %v306, 4
        %v308 = vadd.f32 %v306, %v307
        %v309 = vrot.slane %v308, 2
        %v310 = vadd.f32 %v308, %v309
        %v311 = vrot.slane %v310, 1
        %v312 = vadd.f32 %v310, %v311
        %v313 = vlog2.pop %v305
        %v314 = vmul.f32 %v313, 0.6931472
        %v315 = vlog2.pop %v312
        %v316 = vmul.f32 %v315, 0.6931472
        %v317 = vadd.f32 %v281, %v314
        %v318 = vadd.f32 %v288, %v316
        %v319 = vlaneseq
        %v320 = vshrl.u32 %v319, 7
        %v321 = vlaneseq
        %v322 = vshrl.u32 %v321, 7
        %v323 = vsub.s32 0, %v322
        %v324 = vrot.slane %v270, %v323
        %v325 = vlaneseq
        %v326 = vshrl.u32 %v325, 7
        %v327 = vsub.s32 1, %v326
        %v328 = vrot.slane %v270, %v327
        %vm329 = vcmp.eq.s32.totalorder %v320, %v324
        %vm330 = vcmp.eq.s32.totalorder %v320, %v328
        %v331 = vsel %vm329, %v269, 0.0
        %v332 = vsel %vm330, %v272, 0.0
        %v333 = vsel %vm274, %v331, 0.0
        %v334 = vrot.slane %v333, 4
        %v335 = vadd.f32 %v333, %v334
        %v336 = vrot.slane %v335, 2
        %v337 = vadd.f32 %v335, %v336
        %v338 = vrot.slane %v337, 1
        %v339 = vadd.f32 %v337, %v338
        %v340 = vsel %vm274, %v332, 0.0
        %v341 = vrot.slane %v340, 4
        %v342 = vadd.f32 %v340, %v341
        %v343 = vrot.slane %v342, 2
        %v344 = vadd.f32 %v342, %v343
        %v345 = vrot.slane %v344, 1
        %v346 = vadd.f32 %v344, %v345
        %v347 = vsub.f32 %v317, %v339
        %v348 = vsub.f32 %v318, %v346
        %vm349 = vcmp.ne.s32.totalorder %v270, 4294967295
        %v352 = vcombine.low %v347, %v348
        %v354 = vunpack.c.l.s4 1966171168
        %v355 = vunpack.c.0.s8 %v354
        %v356 = vlaneseq
        %v357 = vshrl.u32 %v356, 7
        %v358 = vsub.s32 %v355, %v357
        %v359 = vrot.slane %v352, %v358
        %v361 = vunpack.c.l.s4 1966171168
        %v362 = vunpack.c.0.s8 %v361
        %v363 = vlaneseq
        %v364 = vshrl.u32 %v363, 7
        %v365 = vsub.s32 %v362, %v364
        %v366 = vrot.slane %v359, %v365
        %v368 = vsel %vm349, %v366, 0.0
        %v369 = vadd.f32 %v268, %v368
        %v370 = vlaneseq
        %vm371 = vcmp.ge.s32.totalorder %v370, 0
        %vm372 = vcmp.lt.s32.totalorder %v370, 256
        %vm373 = vmand %vm371, %vm372
        %374 = vst.msk [vmem:[#allocation2] sm:$0x3] %vm373, %v369
        // Predicated region
        $region41: #{tpu_custom_call.1} parent=27 // pred_check
          %p375 = pneg %p259
        $region42: #{tpu_custom_call.1} parent=27 // pred_check_branch
          %377 = sbr.rel (%p375) target = $region44
        $region43: #{tpu_custom_call.1} parent=27 // pred_region
          %v378 = vld [vmem:[#allocation2] sm:$0x3]
          %v380 = vlaneseq
          %v381 = vshrl.u32 %v380, 7
          %v382 = vsub.s32 0, %v381
          %v383 = vrot.slane %v378, %v382
          %v384 = vlaneseq
          %v385 = vshrl.u32 %v384, 7
          %v386 = vsub.s32 1, %v385
          %v387 = vrot.slane %v378, %v386
          %vm390 = vcmask 1040384
          %v391 = vsel %vm390, %v383, 0.0
          %v392 = vsel %vm390, %v387, 0.0
          %v393 = vadd.f32 %v391, %v392
          %394 = vadd.xlane.f32.xlu0 %v393
          %v395 = vpop.xlane.xlu0 %394
          %v396 = vrot.slane %v395, 4
          %v397 = vadd.f32 %v395, %v396
          %v398 = vrot.slane %v397, 2
          %v399 = vadd.f32 %v397, %v398
          %v400 = vrot.slane %v399, 1
          %v401 = vadd.f32 %v399, %v400
          %s402 = vtos %v401
          %v403 = vstv %s402
          %vm404 = vcmask 0
          %405 = vst.msk [vmem:[%s258] sm:$0x1] %vm404, %v403
        $region44: #{tpu_custom_call.1} parent=27 // pred_fallthru
          _
        %p406 = scmp.lt.s32.totalorder %s24, 0
        %s407 = scalar_select %p406, %s24, 0
        %p408 = scmp.lt.s32.totalorder %s25, 1
        %s409 = scalar_select %p408, %s25, 1
        %s410 = smul.addr %s407, 2
        %s411 = sadd.s32 %s409, %s410
        %s412 = scalar_lea.vmem %s2, %s411
        // Predicated region
        $region45: #{tpu_custom_call.1} parent=27 // pred_check
          %p413 = pneg %p126
        $region46: #{tpu_custom_call.1} parent=27 // pred_check_branch
          %415 = sbr.rel (%p413) target = $region48
        $region47: #{tpu_custom_call.1} parent=27 // pred_region
          _
        $region48: #{tpu_custom_call.1} parent=27 // pred_fallthru
          _
      $region28: #{tpu_custom_call.1} parent=5 // pred_fallthru
        _
      %p416 = scmp.le.s32.totalorder 2, %s14
      // Predicated region
      $region49: #{tpu_custom_call.1} parent=5 // pred_check
        %p417 = pneg %p416
      $region50: #{tpu_custom_call.1} parent=5 // pred_check_branch
        %419 = sbr.rel (%p417) target = $region52
      $region51: #{tpu_custom_call.1} parent=5 // pred_region
        %s420 = ssub.s32 %s14, 2
        // Predicated region
        $region53: #{tpu_custom_call.1} parent=51 // pred_check
          %p421 = pneg %p132
        $region54: #{tpu_custom_call.1} parent=51 // pred_check_branch
          %423 = sbr.rel (%p421) target = $region56
        $region55: #{tpu_custom_call.1} parent=51 // pred_region
          %p424 = scmp.lt.s32.totalorder %s27, 0
          %s425 = scalar_select %p424, %s27, 0
          %p426 = scmp.lt.s32.totalorder %s28, 1
          %s427 = scalar_select %p426, %s28, 1
          %s428 = smul.addr %s425, 2
          %s429 = sadd.s32 %s427, %s428
          %s430 = scalar_lea.vmem %s2, %s429
        $region56: #{tpu_custom_call.1} parent=51 // pred_fallthru
          _
      $region52: #{tpu_custom_call.1} parent=5 // pred_fallthru
        _
    $region6: #{tpu_custom_call.1} parent=1 // loop_footer
      %s18 = sadd.s32 1, %s14
    $region7: #{tpu_custom_call.1} parent=1 // loop_footer_branch
      %13 = sbr.rel target = $region3
    $region8: #{tpu_custom_call.1} parent=1 // loop_exit
      _
    %431 = vsyncpa [#allocation4], 1
    %s432 = scalar_lea.sflag [#allocation4], 1
    %433 = vsyncpa %s432, 1
    %434 = vsyncpa [#allocation6], 1
    %s435 = scalar_lea.sflag [#allocation6], 1
    %436 = vsyncpa %s435, 1

</llo_original>
